<compile_context>
chip_gen: v6e
topology: v6e:2x2x1
jax: 0.10.0
libtpu: 0.0.40
codegen_flags: <defaults>
</compile_context>

<pallas_src>
import functools

import jax
import jax.numpy as jnp
from jax.experimental import pallas as pl
from jax.experimental.pallas import tpu as pltpu

_LANE = 128
_MAX_BLOCK_ROWS = 2048   # 2048 * 128 * 4 B = 1 MiB per f32 input block


def _iou_kernel(x_ref, t_ref, out_ref, *, n, block_rows, num_blocks, need_mask):
    s = pl.program_id(0)           # split index ("parallel")
    j = pl.program_id(1)           # block index within split ("arbitrary")
    bps = pl.num_programs(1)
    gblk = s * bps + j             # global block index (may overrun on tail split)

    # Zero this split's resident partial-sum block at the start of its loop.
    @pl.when(j == 0)
    def _init():
        out_ref[...] = jnp.zeros_like(out_ref)

    def _accumulate(mask_tail):
        x = jax.nn.sigmoid(x_ref[...].astype(jnp.float32))
        t = t_ref[...].astype(jnp.float32)
        if mask_tail:
            row = jax.lax.broadcasted_iota(jnp.int32, x.shape, 0)
            lane = jax.lax.broadcasted_iota(jnp.int32, x.shape, 1)
            flat = (gblk * block_rows + row) * _LANE + lane
            valid = flat < n
            x = jnp.where(valid, x, 0.0)
            t = jnp.where(valid, t, 0.0)
        # Per-lane partials; cross-lane reduction is deferred to the wrapper.
        out_ref[0:1, :] += jnp.sum(x * t, axis=0, keepdims=True)   # intersection
        out_ref[1:2, :] += jnp.sum(x + t, axis=0, keepdims=True)   # total

    if need_mask:
        # Only the last real block can contain padding / out-of-bounds rows.
        @pl.when(gblk == num_blocks - 1)
        def _tail():
            _accumulate(True)

        @pl.when(gblk < num_blocks - 1)
        def _bulk():
            _accumulate(False)
    else:
        @pl.when(gblk < num_blocks)     # skip clamped (redundant) tail blocks
        def _all():
            _accumulate(False)


def iou_loss(inputs, targets, smooth=1.0):
    """1 - IoU, identical semantics to the PyTorch IOU_loss module."""
    x = jnp.reshape(inputs, (-1,))
    t = jnp.reshape(targets, (-1,))
    n = x.shape[0]
    if n == 0:
        return jnp.float32(0.0)

    # Lane alignment only: pad (full copy) ONLY if n is not a multiple of 128.
    pad = (-n) % _LANE
    if pad:
        x = jnp.pad(x, (0, pad))
        t = jnp.pad(t, (0, pad))
    rows = (n + pad) // _LANE

    block_rows = rows if rows < _MAX_BLOCK_ROWS else _MAX_BLOCK_ROWS
    num_blocks = pl.cdiv(rows, block_rows)

    # 2-way split across TensorCores (v7x); on 1-TC chips it costs at most one
    # redundant block read, so only enable it when that waste is small/zero.
    if num_blocks >= 8 or (num_blocks >= 2 and num_blocks % 2 == 0):
        split = 2
    else:
        split = 1
    bps = pl.cdiv(num_blocks, split)

    need_mask = (num_blocks * block_rows * _LANE) != n

    x2 = x.reshape(rows, _LANE)
    t2 = t.reshape(rows, _LANE)

    def in_map(s, j):
        # Clamp so the tail split's overrun iterations stay in bounds; those
        # iterations are skipped inside the kernel.
        return (jnp.minimum(s * bps + j, num_blocks - 1), 0)

    in_spec = pl.BlockSpec((block_rows, _LANE), in_map)
    out_spec = pl.BlockSpec((8, _LANE), lambda s, j: (s, 0))

    kernel = functools.partial(
        _iou_kernel, n=n, block_rows=block_rows,
        num_blocks=num_blocks, need_mask=need_mask)

    partials = pl.pallas_call(
        kernel,
        out_shape=jax.ShapeDtypeStruct((split * 8, _LANE), jnp.float32),
        grid_spec=pltpu.PrefetchScalarGridSpec(
            num_scalar_prefetch=0,
            grid=(split, bps),
            in_specs=[in_spec, in_spec],
            out_specs=out_spec,
        ),
        compiler_params=pltpu.CompilerParams(
            dimension_semantics=("parallel", "arbitrary")),
    )(x2, t2)

    # Tiny epilogue: cross-lane / cross-split reduce + loss math.
    parts = partials.reshape(split, 8, _LANE)
    intersection = jnp.sum(parts[:, 0, :])
    total = jnp.sum(parts[:, 1, :])
    union = total - intersection
    smooth = jnp.float32(smooth)
    return 1.0 - (intersection + smooth) / (union + smooth)


def _iou_loss_ref(inputs, targets, smooth=1.0):
    x = jax.nn.sigmoid(jnp.reshape(inputs, (-1,)).astype(jnp.float32))
    t = jnp.reshape(targets, (-1,)).astype(jnp.float32)
    intersection = jnp.sum(x * t)
    total = jnp.sum(x + t)
    union = total - intersection
    return 1.0 - (intersection + smooth) / (union + smooth)


if __name__ == "__main__":
    key = jax.random.PRNGKey(0)
    # (a) tiny NCHW case; (b) ragged (n % 128 != 0) single-block case;
    # (c) multi-block case exercising the 2-way split, clamped tail iteration
    #     and in-kernel tail masking.
    cases = [(2, 4, 16, 16), (1, 3, 37, 53), (1, 9, 500, 500)]
    for shape in cases:
        key, k1, k2 = jax.random.split(key, 3)
        inputs = jax.random.normal(k1, shape, dtype=jnp.float32)
        targets = (jax.random.uniform(k2, shape) > 0.5).astype(jnp.float32)

        loss = jax.block_until_ready(iou_loss(inputs, targets, smooth=1.0))
        ref = _iou_loss_ref(inputs, targets, smooth=1.0)
        assert jnp.allclose(loss, ref, rtol=1e-5, atol=1e-5), (shape, loss, ref)

    print("KERNEL_OK")
</pallas_src>

<mosaic_0001>
module attributes {stable_mosaic.version = 11 : i64} {
  func.func @_iou_kernel(%arg0: i32, %arg1: i32, %arg2: memref<16x128xf32, #tpu.memory_space<vmem>>, %arg3: memref<16x128xf32, #tpu.memory_space<vmem>>, %arg4: memref<8x128xf32, #tpu.memory_space<vmem>>) attributes {dimension_semantics = [#tpu.dimension_semantics<parallel>, #tpu.dimension_semantics<arbitrary>], iteration_bounds = array<i64: 1, 1>, scalar_prefetch = 0 : i64, scratch_operands = 0 : i64, tpu.core_type = #tpu.core_type<tc>, window_params = [{transform_indices = @transform_0, window_bounds = array<i64: 16, 128>}, {transform_indices = @transform_1, window_bounds = array<i64: 16, 128>}, {transform_indices = @transform_2, window_bounds = array<i64: 8, 128>}]} {
    %c1_i32 = arith.constant 1 : i32
    %0 = arith.muli %arg0, %c1_i32 : i32
    %1 = arith.addi %0, %arg1 : i32
    %c0_i32 = arith.constant 0 : i32
    %2 = arith.cmpi eq, %arg1, %c0_i32 : i32
    %3 = arith.extui %2 : i1 to i32
    %c0_i32_0 = arith.constant 0 : i32
    %4 = arith.cmpi ne, %3, %c0_i32_0 : i32
    scf.if %4 {
      %cst = arith.constant 0.000000e+00 : f32
      %8 = vector.broadcast %cst : f32 to vector<8x128xf32>
      %c0 = arith.constant 0 : index
      %c0_3 = arith.constant 0 : index
      %9 = vector.load %arg4[%c0, %c0_3] : memref<8x128xf32, #tpu.memory_space<vmem>>, vector<8x128xf32>
      tpu.vector_store %arg4[%c0, %c0_3], %8 {strides = array<i32>} : memref<8x128xf32, #tpu.memory_space<vmem>>, vector<8x128xf32>,
    } else {
    }
    %c1_i32_1 = arith.constant 1 : i32
    %5 = arith.cmpi slt, %1, %c1_i32_1 : i32
    %6 = arith.extui %5 : i1 to i32
    %c0_i32_2 = arith.constant 0 : i32
    %7 = arith.cmpi ne, %6, %c0_i32_2 : i32
    scf.if %7 {
      %c0 = arith.constant 0 : index
      %c0_3 = arith.constant 0 : index
      %8 = vector.load %arg2[%c0, %c0_3] : memref<16x128xf32, #tpu.memory_space<vmem>>, vector<16x128xf32>
      %9 = arith.negf %8 : vector<16x128xf32>
      %10 = math.exp %9 : vector<16x128xf32>
      %cst = arith.constant 1.000000e+00 : f32
      %11 = vector.broadcast %cst : f32 to vector<16x128xf32>
      %12 = arith.addf %11, %10 : vector<16x128xf32>
      %13 = arith.divf %11, %12 : vector<16x128xf32>
      %c0_4 = arith.constant 0 : index
      %c0_5 = arith.constant 0 : index
      %14 = vector.load %arg3[%c0_4, %c0_5] : memref<16x128xf32, #tpu.memory_space<vmem>>, vector<16x128xf32>
      %c0_6 = arith.constant 0 : index
      %c0_7 = arith.constant 0 : index
      %15 = vector.load %arg4[%c0_6, %c0_7] : memref<8x128xf32, #tpu.memory_space<vmem>>, vector<1x128xf32>
      %16 = arith.mulf %13, %14 : vector<16x128xf32>
      %cst_8 = arith.constant dense<0.000000e+00> : vector<128xf32>
      %17 = vector.multi_reduction <add>, %16, %cst_8 [0] : vector<16x128xf32> to vector<128xf32>
      %18 = vector.shape_cast %17 : vector<128xf32> to vector<1x128xf32>
      %19 = arith.addf %15, %18 : vector<1x128xf32>
      %c0_9 = arith.constant 0 : index
      %c0_10 = arith.constant 0 : index
      %20 = vector.load %arg4[%c0_9, %c0_10] : memref<8x128xf32, #tpu.memory_space<vmem>>, vector<1x128xf32>
      tpu.vector_store %arg4[%c0_9, %c0_10], %19 {strides = array<i32>} : memref<8x128xf32, #tpu.memory_space<vmem>>, vector<1x128xf32>,
      %c1 = arith.constant 1 : index
      %c0_11 = arith.constant 0 : index
      %21 = vector.load %arg4[%c1, %c0_11] : memref<8x128xf32, #tpu.memory_space<vmem>>, vector<1x128xf32>
      %22 = arith.addf %13, %14 : vector<16x128xf32>
      %cst_12 = arith.constant dense<0.000000e+00> : vector<128xf32>
      %23 = vector.multi_reduction <add>, %22, %cst_12 [0] : vector<16x128xf32> to vector<128xf32>
      %24 = vector.shape_cast %23 : vector<128xf32> to vector<1x128xf32>
      %25 = arith.addf %21, %24 : vector<1x128xf32>
      %c1_13 = arith.constant 1 : index
      %c0_14 = arith.constant 0 : index
      %26 = vector.load %arg4[%c1_13, %c0_14] : memref<8x128xf32, #tpu.memory_space<vmem>>, vector<1x128xf32>
      tpu.vector_store %arg4[%c1_13, %c0_14], %25 {strides = array<i32>} : memref<8x128xf32, #tpu.memory_space<vmem>>, vector<1x128xf32>,
    } else {
    }
    return
  }
  func.func @transform_0(%arg0: i32, %arg1: i32) -> (i32, i32) {
    %c1_i32 = arith.constant 1 : i32
    %0 = arith.muli %arg0, %c1_i32 : i32
    %1 = arith.addi %0, %arg1 : i32
    %c0_i32 = arith.constant 0 : i32
    %2 = arith.minsi %1, %c0_i32 : i32
    %c0_i32_0 = arith.constant 0 : i32
    %c0_i32_1 = arith.constant 0 : i32
    return %2, %c0_i32_0 : i32, i32
  }
  func.func @transform_1(%arg0: i32, %arg1: i32) -> (i32, i32) {
    %c1_i32 = arith.constant 1 : i32
    %0 = arith.muli %arg0, %c1_i32 : i32
    %1 = arith.addi %0, %arg1 : i32
    %c0_i32 = arith.constant 0 : i32
    %2 = arith.minsi %1, %c0_i32 : i32
    %c0_i32_0 = arith.constant 0 : i32
    %c0_i32_1 = arith.constant 0 : i32
    return %2, %c0_i32_0 : i32, i32
  }
  func.func @transform_2(%arg0: i32, %arg1: i32) -> (i32, i32) {
    %c0_i32 = arith.constant 0 : i32
    %c0_i32_0 = arith.constant 0 : i32
    return %arg0, %c0_i32 : i32, i32
  }
}

</mosaic_0001>

<llo_original>
// kernel: tpu_custom_call.1
$region0: #{tpu_custom_call.1}
  #allocation0 [shape = 'u32[]', space=smem, size = 0x4, offset = 0x4, fixed_abs, tag = 'smem constant byte address 0x4 - core index']
  #allocation1 [shape = 'u32[144,128]{1,0:T(1,128)}', space=vmem, size = 0x12000, scoped, tag = 'internal scratch']
  %s0 = inlined_call_operand.hbm [shape: f32[16,128], index: 0, kind: input, shape index: {}]
  %s1 = inlined_call_operand.hbm [shape: f32[16,128], index: 1, kind: input, shape index: {}]
  %s2 = inlined_call_operand.hbm [shape: f32[8,128], index: 2, kind: output, shape index: {}]
  %s3 = sld [smem:[#allocation0]]
  $region34: #{tpu_custom_call.1} parent=0
    _
  %s5 = ssub.s32 1, %s3
  %s6 = scalar_select 0, %s5, %s3
  $region1: #{tpu_custom_call.1} parent=0
    #allocation2 [shape = 'u8[8192]{0}', space=vmem, size = 0x2000, scoped, tag = 'input window, operand 0, single buffered']
    #allocation3 [shape = 's32[1]{0}', space=sflag, size = 0x4, scoped, tag = 'scoped memory for tpu_custom_call.1']
    #allocation4 [shape = 's32[1]{0}', space=sflag, size = 0x4, scoped, tag = 'scoped memory for tpu_custom_call.1']
    #allocation5 [shape = 'u8[8192]{0}', space=vmem, size = 0x2000, scoped, tag = 'input window, operand 1, single buffered']
    #allocation6 [shape = 's32[1]{0}', space=sflag, size = 0x4, scoped, tag = 'scoped memory for tpu_custom_call.1']
    #allocation7 [shape = 'u8[4096]{0}', space=vmem, size = 0x1000, scoped, tag = 'output window, operand 0, single buffered']
    %7 = vsyncpa [#allocation3], 0
    %8 = vsyncpa [#allocation6], 0
    %9 = vsyncpa [#allocation4], 0
    // Predicated region
    $region2: #{tpu_custom_call.1} parent=1 // pred_check
      _
    $region3: #{tpu_custom_call.1} parent=1 // pred_check_branch
      %11 = sbr.rel (0) target = $region5
    $region4: #{tpu_custom_call.1} parent=1 // pred_region
      %s12 = sadd.s32 0, 0
      %p13 = scmp.lt.s32.totalorder %s12, 0
      %s14 = scalar_select %p13, %s12, 0
      %s15 = smul.u32 2, %s14
      %s17 = ssub.s32 256, 256
      %18 = vsyncadd [#allocation3], %s17
      %s19 = smul.addr %s15, 128
      %s20 = scalar_lea.hbm %s0, %s19
      %s21 = sshll.u32 [#allocation2], 4
      %s22 = int_to_ptr.vmem [resolvable:$true] %s21
      %27 = dma.hbm_to_vmem [thread:$0]  %s20, 256, %s22, [#allocation3], 128, 128, 8
    $region5: #{tpu_custom_call.1} parent=1 // pred_fallthru
      _
    // Predicated region
    $region6: #{tpu_custom_call.1} parent=1 // pred_check
      _
    $region7: #{tpu_custom_call.1} parent=1 // pred_check_branch
      %29 = sbr.rel (0) target = $region9
    $region8: #{tpu_custom_call.1} parent=1 // pred_region
      %s30 = sadd.s32 0, 0
      %p31 = scmp.lt.s32.totalorder %s30, 0
      %s32 = scalar_select %p31, %s30, 0
      %s33 = smul.u32 2, %s32
      %s35 = ssub.s32 256, 256
      %36 = vsyncadd [#allocation6], %s35
      %s37 = smul.addr %s33, 128
      %s38 = scalar_lea.hbm %s1, %s37
      %s39 = sshll.u32 [#allocation5], 4
      %s40 = int_to_ptr.vmem [resolvable:$true] %s39
      %45 = dma.hbm_to_vmem [thread:$0]  %s38, 256, %s40, [#allocation6], 128, 128, 8
    $region9: #{tpu_custom_call.1} parent=1 // pred_fallthru
      _
    // Predicated region
    $region10: #{tpu_custom_call.1} parent=1 // pred_check
      _
    $region11: #{tpu_custom_call.1} parent=1 // pred_check_branch
      %47 = sbr.rel (0) target = $region13
    $region12: #{tpu_custom_call.1} parent=1 // pred_region
      %48 = dma.done [#allocation3], 256
    $region13: #{tpu_custom_call.1} parent=1 // pred_fallthru
      _
    // Predicated region
    $region14: #{tpu_custom_call.1} parent=1 // pred_check
      _
    $region15: #{tpu_custom_call.1} parent=1 // pred_check_branch
      %50 = sbr.rel (0) target = $region17
    $region16: #{tpu_custom_call.1} parent=1 // pred_region
      %51 = dma.done [#allocation6], 256
    $region17: #{tpu_custom_call.1} parent=1 // pred_fallthru
      _
    %s52 = sadd.s32 0, 0
    %p53 = scmp.lt.s32.totalorder %s52, 0
    %s54 = scalar_select %p53, %s52, 0
    %s55 = smul.u32 2, %s54
    %s56 = sadd.s32 0, 0
    %p57 = scmp.lt.s32.totalorder %s56, 0
    %s58 = scalar_select %p57, %s56, 0
    %s59 = smul.u32 2, %s58
    %s60 = sadd.s32 0, 0
    %p61 = scmp.eq.s32.totalorder 0, 0
    // Predicated region
    $region18: #{tpu_custom_call.1} parent=1 // pred_check
      %p62 = pneg %p61
    $region19: #{tpu_custom_call.1} parent=1 // pred_check_branch
      %64 = sbr.rel (%p62) target = $region21
    $region20: #{tpu_custom_call.1} parent=1 // pred_region
      %65 = vst [vmem:[#allocation7] sm:$0xff] 0.0
    $region21: #{tpu_custom_call.1} parent=1 // pred_fallthru
      _
    %p66 = scmp.lt.s32.totalorder %s60, 1
    // Predicated region
    $region22: #{tpu_custom_call.1} parent=1 // pred_check
      %p67 = pneg %p66
    $region23: #{tpu_custom_call.1} parent=1 // pred_check_branch
      %69 = sbr.rel (%p67) target = $region25
    $region24: #{tpu_custom_call.1} parent=1 // pred_region
      %v70 = vld [vmem:[#allocation2] sm:$0xff]
      %v71 = vld [vmem:[#allocation2 + $0x8] sm:$0xff]
      %v72 = vxor.u32 %v70, 2147483648
      %v73 = vxor.u32 %v71, 2147483648
      %v74 = vmul.f32 %v72, 1.442695
      %v75 = vpow.pop %v74
      %v76 = vmul.f32 %v73, 1.442695
      %v77 = vpow.pop %v76
      %v78 = vadd.f32 %v75, 1.0
      %v79 = vadd.f32 %v77, 1.0
      %v80 = vrcp.pop %v78
      %v81 = vmul.f32 1.0, %v80
      %v82 = vrcp.pop %v79
      %v83 = vmul.f32 1.0, %v82
      %v84 = vld [vmem:[#allocation5] sm:$0xff]
      %v85 = vld [vmem:[#allocation5 + $0x8] sm:$0xff]
      %v86 = vld [vmem:[#allocation7] sm:$0x1]
      %v87 = vmul.f32 %v81, %v84
      %v88 = vmul.f32 %v83, %v85
      %v89 = vadd.f32 %v87, %v88
      %v90 = vrot.slane %v89, 4
      %v91 = vadd.f32 %v89, %v90
      %v92 = vrot.slane %v91, 2
      %v93 = vadd.f32 %v91, %v92
      %v94 = vrot.slane %v93, 1
      %v95 = vadd.f32 %v93, %v94
      %v96 = vadd.f32 %v86, %v95
      %97 = vst [vmem:[#allocation7] sm:$0x1] %v96
      %v98 = vld [vmem:[#allocation7 + $0x1] sm:$0x1]
      %v99 = vadd.f32 %v81, %v84
      %v100 = vadd.f32 %v83, %v85
      %v101 = vadd.f32 %v99, %v100
      %v102 = vrot.slane %v101, 4
      %v103 = vadd.f32 %v101, %v102
      %v104 = vrot.slane %v103, 2
      %v105 = vadd.f32 %v103, %v104
      %v106 = vrot.slane %v105, 1
      %v107 = vadd.f32 %v105, %v106
      %v108 = vadd.f32 %v98, %v107
      %109 = vst [vmem:[#allocation7 + $0x1] sm:$0x1] %v108
    $region25: #{tpu_custom_call.1} parent=1 // pred_fallthru
      _
    // Predicated region
    $region26: #{tpu_custom_call.1} parent=1 // pred_check
      _
    $region27: #{tpu_custom_call.1} parent=1 // pred_check_branch
      %111 = sbr.rel (0) target = $region29
    $region28: #{tpu_custom_call.1} parent=1 // pred_region
      %s113 = ssub.s32 128, 128
      %114 = vsyncadd [#allocation4], %s113
      %s116 = sshll.u32 [#allocation7], 4
      %s117 = int_to_ptr.vmem [resolvable:$true] %s116
      %119 = dma.vmem_to_hbm [thread:$0]  %s117, 128, %s2, [#allocation4]
    $region29: #{tpu_custom_call.1} parent=1 // pred_fallthru
      _
    // Predicated region
    $region30: #{tpu_custom_call.1} parent=1 // pred_check
      _
    $region31: #{tpu_custom_call.1} parent=1 // pred_check_branch
      %121 = sbr.rel (0) target = $region33
    $region32: #{tpu_custom_call.1} parent=1 // pred_region
      %122 = dma.done [#allocation4], 128
    $region33: #{tpu_custom_call.1} parent=1 // pred_fallthru
      _
    %123 = vsyncpa [#allocation3], 1
    %124 = vsyncpa [#allocation6], 1
    %125 = vsyncpa [#allocation4], 1

</llo_original>
